<compile_context>
chip_gen: v7x
topology: tpu7x:2x2x1
jax: 0.10.0
libtpu: 0.0.40
codegen_flags: <defaults>
</compile_context>

<pallas_src>
import functools

import jax
import jax.numpy as jnp
from jax.experimental import pallas as pl
from jax.experimental.pallas import tpu as pltpu


# ----------------------------------------------------------------------------
# Fused kernel: one (image, row-band) per grid step.
#   x_ref     : (1, Cin, Lfull)       whole H-padded flat image, Lfull=(H+2)*W+2
#   const_ref : (max(Cin,Cmid), Cin+3) packed constants:
#                 [:Cmid, :Cin]   = s2-scaled conv1^T weights
#                 [:Cmid, Cin]    = BN2 shift b2
#                 [:Cin,  Cin+1]  = BN1 scale s1
#                 [:Cin,  Cin+2]  = BN1 shift b1
#   w2_ref    : (3, Cout, 3*Cmid)     3x3 conv weights, per-ky lane-dense slabs (bf16)
#   o_ref     : (1, 1, Cout, TR*W)    lane-dense output band
# ----------------------------------------------------------------------------
def _dense_layer_kernel(x_ref, const_ref, w2_ref, o_ref, *,
                        H, W, TR, nt, Cin, Cmid, Cout, mxu_dtype):
    PB2 = (TR + 2) * W + 2          # band length: (TR+2) rows + 1 flat-pixel slack/side
    TRW = TR * W
    r = pl.program_id(1)

    # ---- unpack the packed constant slab -------------------------------------
    const = const_ref[...]                                   # f32
    w1t = const[:Cmid, :Cin]                                 # (Cmid, Cin) s2-scaled conv1^T
    b2 = const[:Cmid, Cin:Cin + 1]                           # (Cmid, 1)
    s1 = const[:Cin, Cin + 1:Cin + 2]                        # (Cin, 1)
    b1 = const[:Cin, Cin + 2:Cin + 3]                        # (Cin, 1)

    # ---- load this step's (TR+2)-row band of the padded flat input -----------
    if nt == 1:
        xb = x_ref[0].astype(jnp.float32)                    # (Cin, PB2) == full image
    else:
        start = r * TRW
        if TRW % 128 == 0:
            start = pl.multiple_of(start, 128)
        xb = x_ref[0, :, pl.ds(start, PB2)].astype(jnp.float32)

    # ---- stage 1: bn1 + relu + conv1(1x1, BN2 scale pre-folded) + bias + relu
    h = jnp.maximum(xb * s1 + b1, 0.0)                       # (Cin, PB2)
    if Cin <= 8:
        # tiny contraction: VPU broadcast-FMAs, keep the MXU out of it
        t = jnp.zeros((Cmid, PB2), jnp.float32)
        for c in range(Cin):
            t = t + w1t[:, c:c + 1] * h[c:c + 1, :]
    else:
        t = jnp.dot(w1t, h, preferred_element_type=jnp.float32)
    u = jnp.maximum(t + b2, 0.0)                             # (Cmid, PB2)

    # ---- conv2 vertical zero padding == zero the out-of-image row columns of u
    #      (must be applied to u, not x, since BN biases map 0 -> !0)
    cols = jax.lax.broadcasted_iota(jnp.int32, (1, PB2), 1)
    gflat = r * TRW + cols - 1                 # flat index into the H-padded image
    valid = (gflat >= W) & (gflat < (H + 1) * W)
    u = jnp.where(valid, u, 0.0).astype(mxu_dtype)           # bf16 MXU operand

    # ---- conv2 3x3 (padding=1): 3 accumulating matmuls, one per ky -----------
    lane_w = jax.lax.broadcasted_iota(jnp.int32, (1, TRW), 1) % W
    not_left = lane_w != 0
    not_right = lane_w != (W - 1)
    w2 = w2_ref[...]                                         # (3, Cout, 3*Cmid)
    acc = jnp.zeros((Cout, TRW), jnp.float32)
    for ky in range(3):
        slabs = []
        for kx in range(3):
            start = ky * W + kx                              # static shift
            su = u[:, start:start + TRW]                     # (Cmid, TRW)
            if kx == 0:                                      # left tap invalid at w == 0
                su = jnp.where(not_left, su, 0)
            elif kx == 2:                                    # right tap invalid at w == W-1
                su = jnp.where(not_right, su, 0)
            slabs.append(su)
        ucol = jnp.concatenate(slabs, axis=0)                # (3*Cmid, TRW)
        acc = acc + jnp.dot(w2[ky], ucol, preferred_element_type=jnp.float32)
    o_ref[0, 0] = acc.astype(o_ref.dtype)                    # lane-dense store


# ----------------------------------------------------------------------------
# Wrapper: BN folding, weight/constant re-layout, pallas_call, output plumbing.
# ----------------------------------------------------------------------------
def _pick_tr(H, W):
    """Rows per band: prefer TR*W a multiple of 128 and as large as reasonable."""
    divisors = [d for d in range(H, 0, -1) if H % d == 0]
    for d in divisors:
        if (d * W) % 128 == 0 and d * W <= 2048:
            return d
    for d in divisors:
        if d * W <= 2048:
            return d
    return 1


def dense_layer_forward(x_nchw, params, *, eps=1e-5,
                        io_dtype=jnp.float32, mxu_dtype=jnp.bfloat16):
    N, Cin, H, W = x_nchw.shape
    Cmid = params["w1"].shape[1]
    Cout = params["w2"].shape[-1]

    TR = _pick_tr(H, W)                 # H=16, W=16 -> TR=16 (whole image, 256 lanes)
    nt = H // TR
    TRW = TR * W
    Lfull = (H + 2) * W + 2

    # fold eval-mode BN into per-channel scale/shift
    def fold(g, b, m, v):
        s = g / jnp.sqrt(v + eps)
        return s.astype(jnp.float32), (b - m * s).astype(jnp.float32)

    s1, b1 = fold(params["gamma1"], params["beta1"], params["mean1"], params["var1"])
    s2, b2 = fold(params["gamma2"], params["beta2"], params["mean2"], params["var2"])
    # BN2 scale folded into conv1 weights: s2*(w1^T @ h) + b2 == (s2*w1^T) @ h + b2
    w1t = (s2[:, None] * params["w1"].T).astype(jnp.float32)          # (Cmid, Cin)

    # pack all tiny constants into ONE lane-dense f32 slab (single DMA / buffer)
    Rc = max(Cin, Cmid)
    const = jnp.zeros((Rc, Cin + 3), jnp.float32)
    const = const.at[:Cmid, :Cin].set(w1t)
    const = const.at[:Cmid, Cin].set(b2)
    const = const.at[:Cin, Cin + 1].set(s1)
    const = const.at[:Cin, Cin + 2].set(b1)

    # (3,3,Cmid,Cout) HWIO -> (ky, Cout, kx*Cmid) slabs, bf16 for native MXU rate
    w2 = jnp.transpose(params["w2"], (0, 3, 1, 2)).reshape(3, Cout, 3 * Cmid)
    w2 = w2.astype(mxu_dtype)

    # whole H-padded flat image (+1 flat pixel of slack each side) -- no band duplication
    xp = jnp.pad(x_nchw.astype(io_dtype), ((0, 0), (0, 0), (1, 1), (0, 0)))
    xf = jnp.pad(xp.reshape(N, Cin, (H + 2) * W), ((0, 0), (0, 0), (1, 1)))

    kernel = functools.partial(_dense_layer_kernel, H=H, W=W, TR=TR, nt=nt,
                               Cin=Cin, Cmid=Cmid, Cout=Cout, mxu_dtype=mxu_dtype)

    y = pl.pallas_call(
        kernel,
        out_shape=jax.ShapeDtypeStruct((N, nt, Cout, TRW), io_dtype),
        grid=(N, nt),
        in_specs=[
            # x: constant block index across the row axis -> DMA'd once per image
            pl.BlockSpec((1, Cin, Lfull), lambda n, r: (n, 0, 0)),
            pl.BlockSpec((Rc, Cin + 3), lambda n, r: (0, 0)),
            pl.BlockSpec((3, Cout, 3 * Cmid), lambda n, r: (0, 0, 0)),
        ],
        out_specs=pl.BlockSpec((1, 1, Cout, TRW), lambda n, r: (n, r, 0, 0)),
        compiler_params=pltpu.CompilerParams(
            dimension_semantics=("parallel", "parallel"),
            vmem_limit_bytes=32 * 1024 * 1024),
    )(xf, const, w2)

    # layout plumbing back to NCHW (cheap, operates on the small output only)
    y = y.reshape(N, nt, Cout, TR, W).transpose(0, 2, 1, 3, 4).reshape(N, Cout, H, W)
    # TODO(synk): dropout(p=drop_rate) is identity in eval mode -> no-op here.
    return y


# ----------------------------------------------------------------------------
# Pure-JAX reference (validation only).
# ----------------------------------------------------------------------------
def ref_forward(x_nchw, p, eps=1e-5):
    x = x_nchw.astype(jnp.float32)

    def bn(t, g, b, m, v):
        return (g[None, :, None, None] * (t - m[None, :, None, None])
                / jnp.sqrt(v[None, :, None, None] + eps)
                + b[None, :, None, None])

    h = jnp.maximum(bn(x, p["gamma1"], p["beta1"], p["mean1"], p["var1"]), 0.0)
    t = jnp.einsum("nchw,cd->ndhw", h, p["w1"])
    u = jnp.maximum(bn(t, p["gamma2"], p["beta2"], p["mean2"], p["var2"]), 0.0)
    y = jax.lax.conv_general_dilated(
        u, p["w2"], window_strides=(1, 1), padding="SAME",
        dimension_numbers=("NCHW", "HWIO", "NCHW"))
    return y


# ----------------------------------------------------------------------------
if __name__ == "__main__":
    # _DenseLayer(num_input_features=4, growth_rate=8, bn_size=4, drop_rate=0.)
    num_input_features, growth_rate, bn_size = 4, 8, 4
    Cin = num_input_features
    Cmid = bn_size * growth_rate          # 32
    Cout = growth_rate                    # 8
    N, H, W = 2, 16, 16

    key = jax.random.PRNGKey(0)
    ks = jax.random.split(key, 11)

    params = {
        # BatchNorm2d(num_input_features)
        "gamma1": jax.random.uniform(ks[0], (Cin,), minval=0.5, maxval=1.5),
        "beta1": 0.1 * jax.random.normal(ks[1], (Cin,)),
        "mean1": 0.1 * jax.random.normal(ks[2], (Cin,)),
        "var1": jax.random.uniform(ks[3], (Cin,), minval=0.5, maxval=1.5),
        # Conv2d(Cin, Cmid, k=1, bias=False) stored as (Cin, Cmid)
        "w1": 0.1 * jax.random.normal(ks[4], (Cin, Cmid)),
        # BatchNorm2d(Cmid)
        "gamma2": jax.random.uniform(ks[5], (Cmid,), minval=0.5, maxval=1.5),
        "beta2": 0.1 * jax.random.normal(ks[6], (Cmid,)),
        "mean2": 0.1 * jax.random.normal(ks[7], (Cmid,)),
        "var2": jax.random.uniform(ks[8], (Cmid,), minval=0.5, maxval=1.5),
        # Conv2d(Cmid, Cout, k=3, pad=1, bias=False) stored HWIO (3,3,Cmid,Cout)
        "w2": 0.1 * jax.random.normal(ks[9], (3, 3, Cmid, Cout)),
    }

    x = jax.random.normal(ks[10], (N, Cin, H, W), dtype=jnp.float32)   # NCHW

    y_ref = ref_forward(x, params)

    # strict path: f32 I/O + f32 MXU operands (tight check)
    y_strict = dense_layer_forward(x, params, mxu_dtype=jnp.float32)
    jax.block_until_ready(y_strict)
    assert y_strict.shape == (N, Cout, H, W)
    assert jnp.allclose(y_strict, y_ref, atol=1e-3, rtol=1e-3), (
        float(jnp.max(jnp.abs(y_strict - y_ref))))

    # default path: f32 I/O, bf16 MXU operands with f32 accumulation (looser check)
    y = dense_layer_forward(x, params)
    jax.block_until_ready(y)
    assert jnp.allclose(y, y_ref, atol=5e-2, rtol=5e-2), (
        float(jnp.max(jnp.abs(y - y_ref))))

    # bf16 I/O path (halved HBM traffic, bf16 output writeback) - loose check
    y16 = dense_layer_forward(x, params, io_dtype=jnp.bfloat16)
    jax.block_until_ready(y16)
    assert y16.dtype == jnp.bfloat16
    assert jnp.allclose(y16.astype(jnp.float32), y_ref, atol=5e-2, rtol=5e-2), (
        float(jnp.max(jnp.abs(y16.astype(jnp.float32) - y_ref))))

    print("KERNEL_OK")
</pallas_src>

<mosaic_0001>
module attributes {stable_mosaic.version = 11 : i64} {
  func.func @_dense_layer_kernel(%arg0: i32, %arg1: i32, %arg2: memref<1x4x290xf32, #tpu.memory_space<vmem>>, %arg3: memref<32x7xf32, #tpu.memory_space<vmem>>, %arg4: memref<3x8x96xf32, #tpu.memory_space<vmem>>, %arg5: memref<1x1x8x256xf32, #tpu.memory_space<vmem>>) attributes {dimension_semantics = [#tpu.dimension_semantics<parallel>, #tpu.dimension_semantics<parallel>], iteration_bounds = array<i64: 2, 1>, scalar_prefetch = 0 : i64, scratch_operands = 0 : i64, tpu.core_type = #tpu.core_type<tc>, window_params = [{transform_indices = @transform_0, window_bounds = array<i64: 1, 4, 290>}, {pipeline_mode = #tpu.pipeline_mode<synchronous>, transform_indices = @transform_1, window_bounds = array<i64: 32, 7>}, {pipeline_mode = #tpu.pipeline_mode<synchronous>, transform_indices = @transform_2, window_bounds = array<i64: 3, 8, 96>}, {transform_indices = @transform_3, window_bounds = array<i64: 1, 1, 8, 256>}]} {
    %c0 = arith.constant 0 : index
    %c0_0 = arith.constant 0 : index
    %0 = vector.load %arg3[%c0, %c0_0] : memref<32x7xf32, #tpu.memory_space<vmem>>, vector<32x7xf32>
    %1 = vector.extract_strided_slice %0 {offsets = [0, 0], sizes = [32, 4], strides = [1, 1]} : vector<32x7xf32> to vector<32x4xf32>
    %2 = vector.extract_strided_slice %0 {offsets = [0, 4], sizes = [32, 1], strides = [1, 1]} : vector<32x7xf32> to vector<32x1xf32>
    %3 = vector.extract_strided_slice %0 {offsets = [0, 5], sizes = [4, 1], strides = [1, 1]} : vector<32x7xf32> to vector<4x1xf32>
    %4 = vector.extract_strided_slice %0 {offsets = [0, 6], sizes = [4, 1], strides = [1, 1]} : vector<32x7xf32> to vector<4x1xf32>
    %c0_1 = arith.constant 0 : index
    %c0_2 = arith.constant 0 : index
    %c0_3 = arith.constant 0 : index
    %5 = vector.load %arg2[%c0_1, %c0_2, %c0_3] : memref<1x4x290xf32, #tpu.memory_space<vmem>>, vector<1x4x290xf32>
    %6 = vector.shape_cast %5 : vector<1x4x290xf32> to vector<4x290xf32>
    %7 = vector.broadcast %3 : vector<4x1xf32> to vector<4x290xf32>
    %8 = arith.mulf %6, %7 : vector<4x290xf32>
    %9 = vector.broadcast %4 : vector<4x1xf32> to vector<4x290xf32>
    %10 = arith.addf %8, %9 : vector<4x290xf32>
    %cst = arith.constant 0.000000e+00 : f32
    %11 = vector.broadcast %cst : f32 to vector<4x290xf32>
    %12 = arith.maximumf %10, %11 : vector<4x290xf32>
    %cst_4 = arith.constant 0.000000e+00 : f32
    %13 = vector.broadcast %cst_4 : f32 to vector<32x290xf32>
    %14 = vector.extract_strided_slice %1 {offsets = [0, 0], sizes = [32, 1], strides = [1, 1]} : vector<32x4xf32> to vector<32x1xf32>
    %15 = vector.extract_strided_slice %12 {offsets = [0, 0], sizes = [1, 290], strides = [1, 1]} : vector<4x290xf32> to vector<1x290xf32>
    %16 = vector.broadcast %14 : vector<32x1xf32> to vector<32x290xf32>
    %17 = vector.broadcast %15 : vector<1x290xf32> to vector<32x290xf32>
    %18 = arith.mulf %16, %17 : vector<32x290xf32>
    %19 = arith.addf %13, %18 : vector<32x290xf32>
    %20 = vector.extract_strided_slice %1 {offsets = [0, 1], sizes = [32, 1], strides = [1, 1]} : vector<32x4xf32> to vector<32x1xf32>
    %21 = vector.extract_strided_slice %12 {offsets = [1, 0], sizes = [1, 290], strides = [1, 1]} : vector<4x290xf32> to vector<1x290xf32>
    %22 = vector.broadcast %20 : vector<32x1xf32> to vector<32x290xf32>
    %23 = vector.broadcast %21 : vector<1x290xf32> to vector<32x290xf32>
    %24 = arith.mulf %22, %23 : vector<32x290xf32>
    %25 = arith.addf %19, %24 : vector<32x290xf32>
    %26 = vector.extract_strided_slice %1 {offsets = [0, 2], sizes = [32, 1], strides = [1, 1]} : vector<32x4xf32> to vector<32x1xf32>
    %27 = vector.extract_strided_slice %12 {offsets = [2, 0], sizes = [1, 290], strides = [1, 1]} : vector<4x290xf32> to vector<1x290xf32>
    %28 = vector.broadcast %26 : vector<32x1xf32> to vector<32x290xf32>
    %29 = vector.broadcast %27 : vector<1x290xf32> to vector<32x290xf32>
    %30 = arith.mulf %28, %29 : vector<32x290xf32>
    %31 = arith.addf %25, %30 : vector<32x290xf32>
    %32 = vector.extract_strided_slice %1 {offsets = [0, 3], sizes = [32, 1], strides = [1, 1]} : vector<32x4xf32> to vector<32x1xf32>
    %33 = vector.extract_strided_slice %12 {offsets = [3, 0], sizes = [1, 290], strides = [1, 1]} : vector<4x290xf32> to vector<1x290xf32>
    %34 = vector.broadcast %32 : vector<32x1xf32> to vector<32x290xf32>
    %35 = vector.broadcast %33 : vector<1x290xf32> to vector<32x290xf32>
    %36 = arith.mulf %34, %35 : vector<32x290xf32>
    %37 = arith.addf %31, %36 : vector<32x290xf32>
    %38 = vector.broadcast %2 : vector<32x1xf32> to vector<32x290xf32>
    %39 = arith.addf %37, %38 : vector<32x290xf32>
    %cst_5 = arith.constant 0.000000e+00 : f32
    %40 = vector.broadcast %cst_5 : f32 to vector<32x290xf32>
    %41 = arith.maximumf %39, %40 : vector<32x290xf32>
    %42 = tpu.iota {dimensions = array<i32: 1>} : vector<1x290xi32>
    %c256_i32 = arith.constant 256 : i32
    %43 = arith.muli %arg1, %c256_i32 : i32
    %44 = vector.broadcast %43 : i32 to vector<1x290xi32>
    %45 = arith.addi %44, %42 : vector<1x290xi32>
    %c1_i32 = arith.constant 1 : i32
    %46 = vector.broadcast %c1_i32 : i32 to vector<1x290xi32>
    %47 = arith.subi %45, %46 : vector<1x290xi32>
    %c16_i32 = arith.constant 16 : i32
    %48 = vector.broadcast %c16_i32 : i32 to vector<1x290xi32>
    %49 = arith.cmpi sge, %47, %48 : vector<1x290xi32>
    %c272_i32 = arith.constant 272 : i32
    %50 = vector.broadcast %c272_i32 : i32 to vector<1x290xi32>
    %51 = arith.cmpi slt, %47, %50 : vector<1x290xi32>
    %52 = arith.andi %49, %51 : vector<1x290xi1>
    %cst_6 = arith.constant 0.000000e+00 : f32
    %53 = vector.shape_cast %52 : vector<1x290xi1> to vector<1x290xi1>
    %54 = vector.broadcast %53 : vector<1x290xi1> to vector<32x290xi1>
    %55 = vector.broadcast %cst_6 : f32 to vector<32x290xf32>
    %56 = arith.select %54, %41, %55 : vector<32x290xi1>, vector<32x290xf32>
    %57 = tpu.iota {dimensions = array<i32: 1>} : vector<1x256xi32>
    %c16_i32_7 = arith.constant 16 : i32
    %c0_i32 = arith.constant 0 : i32
    %58 = arith.cmpi eq, %c16_i32_7, %c0_i32 : i32
    %c1_i32_8 = arith.constant 1 : i32
    %59 = arith.select %58, %c1_i32_8, %c16_i32_7 : i32
    %60 = vector.broadcast %59 : i32 to vector<1x256xi32>
    %61 = arith.remsi %57, %60 : vector<1x256xi32>
    %c0_i32_9 = arith.constant 0 : i32
    %62 = vector.broadcast %c0_i32_9 : i32 to vector<1x256xi32>
    %63 = arith.cmpi ne, %61, %62 : vector<1x256xi32>
    %c0_i32_10 = arith.constant 0 : i32
    %64 = vector.broadcast %c0_i32_10 : i32 to vector<1x256xi32>
    %65 = arith.cmpi slt, %61, %64 : vector<1x256xi32>
    %c0_i32_11 = arith.constant 0 : i32
    %66 = arith.cmpi slt, %59, %c0_i32_11 : i32
    %67 = vector.broadcast %66 : i1 to vector<1x256xi1>
    %68 = vector.broadcast %67 : vector<1x256xi1> to vector<1x256xi1>
    %69 = arith.xori %65, %68 : vector<1x256xi1>
    %70 = arith.andi %69, %63 : vector<1x256xi1>
    %71 = vector.broadcast %59 : i32 to vector<1x256xi32>
    %72 = arith.addi %61, %71 : vector<1x256xi32>
    %73 = arith.select %70, %72, %61 : vector<1x256xi1>, vector<1x256xi32>
    %c0_i32_12 = arith.constant 0 : i32
    %74 = vector.broadcast %c0_i32_12 : i32 to vector<1x256xi32>
    %75 = arith.cmpi ne, %73, %74 : vector<1x256xi32>
    %c15_i32 = arith.constant 15 : i32
    %76 = vector.broadcast %c15_i32 : i32 to vector<1x256xi32>
    %77 = arith.cmpi ne, %73, %76 : vector<1x256xi32>
    %c0_13 = arith.constant 0 : index
    %c0_14 = arith.constant 0 : index
    %c0_15 = arith.constant 0 : index
    %78 = vector.load %arg4[%c0_13, %c0_14, %c0_15] : memref<3x8x96xf32, #tpu.memory_space<vmem>>, vector<3x8x96xf32>
    %cst_16 = arith.constant 0.000000e+00 : f32
    %79 = vector.broadcast %cst_16 : f32 to vector<8x256xf32>
    %80 = vector.extract_strided_slice %56 {offsets = [0, 0], sizes = [32, 256], strides = [1, 1]} : vector<32x290xf32> to vector<32x256xf32>
    %c0_i32_17 = arith.constant 0 : i32
    %81 = arith.sitofp %c0_i32_17 : i32 to f32
    %82 = vector.shape_cast %75 : vector<1x256xi1> to vector<1x256xi1>
    %83 = vector.broadcast %82 : vector<1x256xi1> to vector<32x256xi1>
    %84 = vector.broadcast %81 : f32 to vector<32x256xf32>
    %85 = arith.select %83, %80, %84 : vector<32x256xi1>, vector<32x256xf32>
    %86 = vector.extract_strided_slice %56 {offsets = [0, 1], sizes = [32, 256], strides = [1, 1]} : vector<32x290xf32> to vector<32x256xf32>
    %87 = vector.extract_strided_slice %56 {offsets = [0, 2], sizes = [32, 256], strides = [1, 1]} : vector<32x290xf32> to vector<32x256xf32>
    %c0_i32_18 = arith.constant 0 : i32
    %88 = arith.sitofp %c0_i32_18 : i32 to f32
    %89 = vector.shape_cast %77 : vector<1x256xi1> to vector<1x256xi1>
    %90 = vector.broadcast %89 : vector<1x256xi1> to vector<32x256xi1>
    %91 = vector.broadcast %88 : f32 to vector<32x256xf32>
    %92 = arith.select %90, %87, %91 : vector<32x256xi1>, vector<32x256xf32>
    %93 = tpu.concatenate %85, %86, %92 in 0 : vector<32x256xf32>, vector<32x256xf32>, vector<32x256xf32> -> vector<96x256xf32>
    %94 = vector.extract_strided_slice %78 {offsets = [0, 0, 0], sizes = [1, 8, 96], strides = [1, 1, 1]} : vector<3x8x96xf32> to vector<1x8x96xf32>
    %95 = vector.shape_cast %94 : vector<1x8x96xf32> to vector<8x96xf32>
    %cst_19 = arith.constant dense<0.000000e+00> : vector<8x256xf32>
    %96 = tpu.matmul %95, %93, %cst_19 {dimension_numbers = #tpu.dot_dimension_numbers<[1], [0], [0], [1], [0, 0, 1, 1], [], []>} : vector<8x96xf32>, vector<96x256xf32>, vector<8x256xf32> -> vector<8x256xf32>
    %97 = arith.addf %79, %96 : vector<8x256xf32>
    %98 = vector.extract_strided_slice %56 {offsets = [0, 16], sizes = [32, 256], strides = [1, 1]} : vector<32x290xf32> to vector<32x256xf32>
    %c0_i32_20 = arith.constant 0 : i32
    %99 = arith.sitofp %c0_i32_20 : i32 to f32
    %100 = vector.shape_cast %75 : vector<1x256xi1> to vector<1x256xi1>
    %101 = vector.broadcast %100 : vector<1x256xi1> to vector<32x256xi1>
    %102 = vector.broadcast %99 : f32 to vector<32x256xf32>
    %103 = arith.select %101, %98, %102 : vector<32x256xi1>, vector<32x256xf32>
    %104 = vector.extract_strided_slice %56 {offsets = [0, 17], sizes = [32, 256], strides = [1, 1]} : vector<32x290xf32> to vector<32x256xf32>
    %105 = vector.extract_strided_slice %56 {offsets = [0, 18], sizes = [32, 256], strides = [1, 1]} : vector<32x290xf32> to vector<32x256xf32>
    %c0_i32_21 = arith.constant 0 : i32
    %106 = arith.sitofp %c0_i32_21 : i32 to f32
    %107 = vector.shape_cast %77 : vector<1x256xi1> to vector<1x256xi1>
    %108 = vector.broadcast %107 : vector<1x256xi1> to vector<32x256xi1>
    %109 = vector.broadcast %106 : f32 to vector<32x256xf32>
    %110 = arith.select %108, %105, %109 : vector<32x256xi1>, vector<32x256xf32>
    %111 = tpu.concatenate %103, %104, %110 in 0 : vector<32x256xf32>, vector<32x256xf32>, vector<32x256xf32> -> vector<96x256xf32>
    %112 = vector.extract_strided_slice %78 {offsets = [1, 0, 0], sizes = [1, 8, 96], strides = [1, 1, 1]} : vector<3x8x96xf32> to vector<1x8x96xf32>
    %113 = vector.shape_cast %112 : vector<1x8x96xf32> to vector<8x96xf32>
    %cst_22 = arith.constant dense<0.000000e+00> : vector<8x256xf32>
    %114 = tpu.matmul %113, %111, %cst_22 {dimension_numbers = #tpu.dot_dimension_numbers<[1], [0], [0], [1], [0, 0, 1, 1], [], []>} : vector<8x96xf32>, vector<96x256xf32>, vector<8x256xf32> -> vector<8x256xf32>
    %115 = arith.addf %97, %114 : vector<8x256xf32>
    %116 = vector.extract_strided_slice %56 {offsets = [0, 32], sizes = [32, 256], strides = [1, 1]} : vector<32x290xf32> to vector<32x256xf32>
    %c0_i32_23 = arith.constant 0 : i32
    %117 = arith.sitofp %c0_i32_23 : i32 to f32
    %118 = vector.shape_cast %75 : vector<1x256xi1> to vector<1x256xi1>
    %119 = vector.broadcast %118 : vector<1x256xi1> to vector<32x256xi1>
    %120 = vector.broadcast %117 : f32 to vector<32x256xf32>
    %121 = arith.select %119, %116, %120 : vector<32x256xi1>, vector<32x256xf32>
    %122 = vector.extract_strided_slice %56 {offsets = [0, 33], sizes = [32, 256], strides = [1, 1]} : vector<32x290xf32> to vector<32x256xf32>
    %123 = vector.extract_strided_slice %56 {offsets = [0, 34], sizes = [32, 256], strides = [1, 1]} : vector<32x290xf32> to vector<32x256xf32>
    %c0_i32_24 = arith.constant 0 : i32
    %124 = arith.sitofp %c0_i32_24 : i32 to f32
    %125 = vector.shape_cast %77 : vector<1x256xi1> to vector<1x256xi1>
    %126 = vector.broadcast %125 : vector<1x256xi1> to vector<32x256xi1>
    %127 = vector.broadcast %124 : f32 to vector<32x256xf32>
    %128 = arith.select %126, %123, %127 : vector<32x256xi1>, vector<32x256xf32>
    %129 = tpu.concatenate %121, %122, %128 in 0 : vector<32x256xf32>, vector<32x256xf32>, vector<32x256xf32> -> vector<96x256xf32>
    %130 = vector.extract_strided_slice %78 {offsets = [2, 0, 0], sizes = [1, 8, 96], strides = [1, 1, 1]} : vector<3x8x96xf32> to vector<1x8x96xf32>
    %131 = vector.shape_cast %130 : vector<1x8x96xf32> to vector<8x96xf32>
    %cst_25 = arith.constant dense<0.000000e+00> : vector<8x256xf32>
    %132 = tpu.matmul %131, %129, %cst_25 {dimension_numbers = #tpu.dot_dimension_numbers<[1], [0], [0], [1], [0, 0, 1, 1], [], []>} : vector<8x96xf32>, vector<96x256xf32>, vector<8x256xf32> -> vector<8x256xf32>
    %133 = arith.addf %115, %132 : vector<8x256xf32>
    %c0_26 = arith.constant 0 : index
    %c0_27 = arith.constant 0 : index
    %c0_28 = arith.constant 0 : index
    %c0_29 = arith.constant 0 : index
    %134 = vector.load %arg5[%c0_26, %c0_27, %c0_28, %c0_29] : memref<1x1x8x256xf32, #tpu.memory_space<vmem>>, vector<1x1x8x256xf32>
    %135 = vector.shape_cast %134 : vector<1x1x8x256xf32> to vector<8x256xf32>
    %136 = vector.shape_cast %133 : vector<8x256xf32> to vector<1x1x8x256xf32>
    tpu.vector_store %arg5[%c0_26, %c0_27, %c0_28, %c0_29], %136 {strides = array<i32>} : memref<1x1x8x256xf32, #tpu.memory_space<vmem>>, vector<1x1x8x256xf32>,
    return
  }
  func.func @transform_0(%arg0: i32, %arg1: i32) -> (i32, i32, i32) {
    %c0_i32 = arith.constant 0 : i32
    %c0_i32_0 = arith.constant 0 : i32
    %c0_i32_1 = arith.constant 0 : i32
    return %arg0, %c0_i32, %c0_i32_0 : i32, i32, i32
  }
  func.func @transform_1(%arg0: i32, %arg1: i32) -> (i32, i32) {
    %c0_i32 = arith.constant 0 : i32
    %c0_i32_0 = arith.constant 0 : i32
    %c0_i32_1 = arith.constant 0 : i32
    return %c0_i32, %c0_i32_0 : i32, i32
  }
  func.func @transform_2(%arg0: i32, %arg1: i32) -> (i32, i32, i32) {
    %c0_i32 = arith.constant 0 : i32
    %c0_i32_0 = arith.constant 0 : i32
    %c0_i32_1 = arith.constant 0 : i32
    %c0_i32_2 = arith.constant 0 : i32
    return %c0_i32, %c0_i32_0, %c0_i32_1 : i32, i32, i32
  }
  func.func @transform_3(%arg0: i32, %arg1: i32) -> (i32, i32, i32, i32) {
    %c0_i32 = arith.constant 0 : i32
    %c0_i32_0 = arith.constant 0 : i32
    %c0_i32_1 = arith.constant 0 : i32
    return %arg0, %arg1, %c0_i32, %c0_i32_0 : i32, i32, i32, i32
  }
}

</mosaic_0001>

<llo_original>
// kernel: tpu_custom_call.1
$region0: #{tpu_custom_call.1}
  #allocation0 [shape = 'u32[]', space=smem, size = 0x4, offset = 0x4, fixed_abs, tag = 'smem constant byte address 0x4 - core index']
  #allocation1 [shape = 'u32[144,128]{1,0:T(1,128)}', space=vmem, size = 0x12000, scoped, tag = 'internal scratch']
  %s0 = inlined_call_operand.vmem [shape: f32[2,4,290], index: 0, kind: input, shape index: {}]
  %s1 = inlined_call_operand.vmem [shape: f32[32,7], index: 1, kind: input, shape index: {}]
  %s2 = inlined_call_operand.hbm [shape: f32[3,8,96], index: 2, kind: input, shape index: {}]
  %s3 = inlined_call_operand.hbm [shape: f32[2,1,8,256], index: 3, kind: output, shape index: {}]
  %s4 = sld [smem:[#allocation0]]
  $region49: #{tpu_custom_call.1} parent=0
    _
  %s6 = ssub.s32 1, %s4
  %s7 = scalar_select 0, %s6, %s4
  $region1: #{tpu_custom_call.1} parent=0
    #allocation2 [shape = 'u8[12288]{0}', space=vmem, size = 0x3000, scoped, tag = 'input window, operand 2, single buffered']
    #allocation3 [shape = 's32[2]{0}', space=sflag, size = 0x8, scoped, tag = 'scoped memory for tpu_custom_call.1']
    #allocation4 [shape = 's32[2]{0}', space=sflag, size = 0x8, scoped, tag = 'scoped memory for tpu_custom_call.1']
    #allocation5 [shape = 'u8[16384]{0}', space=vmem, size = 0x4000, scoped, tag = 'output window, operand 0']
    %8 = vsyncpa [#allocation3], 0
    %9 = vsyncpa [#allocation4], 0
    %s10 = scalar_lea.sflag [#allocation4], 1
    %11 = vsyncpa %s10, 0
    loop: start=0, step=1, limit=4
    $region2: #{tpu_custom_call.1} parent=1 // loop_pre_header
      _
    $region3: #{tpu_custom_call.1} parent=1 // loop_header
      %s13 = sphi 0, %s17
      %p14 = scmp.ge.s32.totalorder %s13, 4
      %s20 = sphi 0, %s32
      %s21 = sphi 0, %s28
      %s22 = sphi 0, %s20
      %s23 = sphi 0, %s21
      %s24 = sphi 0, %s22
      %s25 = sphi 0, %s23
      %s35 = sphi 0, %s37
      %s38 = sphi 0, %s35
      %s39 = sphi 0, %s38
      %s55 = sphi 0, %s39
      %s59 = sphi 0, %s59
      %s61 = sphi 0, %s59
      %s62 = sphi 0, %s61
      %s76 = sphi 0, %s62
      %s80 = sphi 0, %s80
      %s82 = sphi 0, %s80
      %s83 = sphi 0, %s82
      %s97 = sphi 0, %s83
      %s105 = sphi 0, %s107
      %s108 = sphi 0, %s105
      %s109 = sphi 0, %s108
      %s125 = sphi 0, %s109
    $region4: #{tpu_custom_call.1} parent=1 // loop_header_branch
      %16 = sbr.rel (%p14) target = $region8
    $region5: #{tpu_custom_call.1} parent=1 // loop_body
      %s18 = ssub.s32 %s13, 1
      %s19 = ssub.s32 %s13, 2
      %s26 = sadd.s32 1, %s21
      %p27 = scmp.ge.s32.totalorder %s26, 1
      %s28 = scalar_select %p27, 0, %s26
      %s29 = sadd.s32 1, %s20
      %s30 = scalar_select %p27, %s29, %s20
      %p31 = scmp.ge.s32.totalorder %s30, 2
      %s32 = scalar_select %p31, 0, %s30
      %s33 = ssub.s32 %s20, %s32
      %p34 = scmp.eq.s32.totalorder %s33, 0
      %s36 = sadd.s32 %s35, 1
      %s37 = scalar_select %p34, %s35, %s36
      %p40 = pneg %p34
      %p41 = scmp.eq.s32.totalorder %s13, 1
      %p42 = por %p40, %p41
      %p43 = scmp.ne.s32.totalorder %s35, %s38
      %p44 = scmp.eq.s32.totalorder %s13, 0
      %p45 = por %p43, %p44
      %p46 = scmp.ne.s32.totalorder %s35, %s38
      %p47 = scmp.eq.s32.totalorder %s18, 1
      %p48 = por %p46, %p47
      %p49 = scmp.ne.s32.totalorder %s38, %s39
      %p50 = scmp.eq.s32.totalorder %s18, 0
      %p51 = por %p49, %p50
      %p52 = scmp.ne.s32.totalorder %s38, %s39
      %p53 = scmp.eq.s32.totalorder %s19, 1
      %p54 = por %p52, %p53
      %p56 = scmp.ne.s32.totalorder %s39, %s55
      %p57 = scmp.eq.s32.totalorder %s19, 0
      %p58 = por %p56, %p57
      %s60 = sadd.s32 %s59, 1
      %p63 = scmp.eq.s32.totalorder %s13, 1
      %p64 = scmp.ne.s32.totalorder %s59, %s61
      %p65 = scmp.eq.s32.totalorder %s13, 0
      %p66 = por %p64, %p65
      %p67 = scmp.ne.s32.totalorder %s59, %s61
      %p68 = scmp.eq.s32.totalorder %s18, 1
      %p69 = por %p67, %p68
      %p70 = scmp.ne.s32.totalorder %s61, %s62
      %p71 = scmp.eq.s32.totalorder %s18, 0
      %p72 = por %p70, %p71
      %p73 = scmp.ne.s32.totalorder %s61, %s62
      %p74 = scmp.eq.s32.totalorder %s19, 1
      %p75 = por %p73, %p74
      %p77 = scmp.ne.s32.totalorder %s62, %s76
      %p78 = scmp.eq.s32.totalorder %s19, 0
      %p79 = por %p77, %p78
      %s81 = sadd.s32 %s80, 1
      %p84 = scmp.eq.s32.totalorder %s13, 1
      %p85 = scmp.ne.s32.totalorder %s80, %s82
      %p86 = scmp.eq.s32.totalorder %s13, 0
      %p87 = por %p85, %p86
      %p88 = scmp.ne.s32.totalorder %s80, %s82
      %p89 = scmp.eq.s32.totalorder %s18, 1
      %p90 = por %p88, %p89
      %p91 = scmp.ne.s32.totalorder %s82, %s83
      %p92 = scmp.eq.s32.totalorder %s18, 0
      %p93 = por %p91, %p92
      %p94 = scmp.ne.s32.totalorder %s82, %s83
      %p95 = scmp.eq.s32.totalorder %s19, 1
      %p96 = por %p94, %p95
      %p98 = scmp.ne.s32.totalorder %s83, %s97
      %p99 = scmp.eq.s32.totalorder %s19, 0
      %p100 = por %p98, %p99
      %s101 = ssub.s32 %s20, %s32
      %s102 = ssub.s32 %s21, %s28
      %s103 = sor.u32 %s101, %s102
      %p104 = scmp.eq.s32.totalorder %s103, 0
      %s106 = sadd.s32 %s105, 1
      %s107 = scalar_select %p104, %s105, %s106
      %p110 = pneg %p104
      %p111 = scmp.eq.s32.totalorder %s13, 1
      %p112 = por %p110, %p111
      %p113 = scmp.ne.s32.totalorder %s105, %s108
      %p114 = scmp.eq.s32.totalorder %s13, 0
      %p115 = por %p113, %p114
      %p116 = scmp.ne.s32.totalorder %s105, %s108
      %p117 = scmp.eq.s32.totalorder %s18, 1
      %p118 = por %p116, %p117
      %p119 = scmp.ne.s32.totalorder %s108, %s109
      %p120 = scmp.eq.s32.totalorder %s18, 0
      %p121 = por %p119, %p120
      %p122 = scmp.ne.s32.totalorder %s108, %s109
      %p123 = scmp.eq.s32.totalorder %s19, 1
      %p124 = por %p122, %p123
      %p126 = scmp.ne.s32.totalorder %s109, %s125
      %p127 = scmp.eq.s32.totalorder %s19, 0
      %p128 = por %p126, %p127
      %p129 = scmp.le.s32.totalorder 1, %s13
      %p130 = scmp.lt.s32.totalorder %s13, 3
      %p131 = pnand %p129, %p130
      %p132 = pneg %p131
      // Predicated region
      $region9: #{tpu_custom_call.1} parent=5 // pred_check
        _
      $region10: #{tpu_custom_call.1} parent=5 // pred_check_branch
        %134 = sbr.rel (%p131) target = $region12
      $region11: #{tpu_custom_call.1} parent=5 // pred_region
        %s135 = ssub.s32 %s13, 1
        // Predicated region
        $region13: #{tpu_custom_call.1} parent=11 // pred_check
          %p136 = pneg %p72
        $region14: #{tpu_custom_call.1} parent=11 // pred_check_branch
          %138 = sbr.rel (%p136) target = $region16
        $region15: #{tpu_custom_call.1} parent=11 // pred_region
          _
        $region16: #{tpu_custom_call.1} parent=11 // pred_fallthru
          _
        // Predicated region
        $region17: #{tpu_custom_call.1} parent=11 // pred_check
          %p139 = pneg %p93
        $region18: #{tpu_custom_call.1} parent=11 // pred_check_branch
          %141 = sbr.rel (%p139) target = $region20
        $region19: #{tpu_custom_call.1} parent=11 // pred_region
          %s143 = ssub.s32 384, 384
          %144 = vsyncadd [#allocation3], %s143
          %s145 = sshll.u32 [#allocation2], 4
          %s146 = int_to_ptr.vmem [resolvable:$true] %s145
          %151 = dma.hbm_to_vmem [thread:$0]  %s2, 384, %s146, [#allocation3], 128, 128, 8
        $region20: #{tpu_custom_call.1} parent=11 // pred_fallthru
          _
      $region12: #{tpu_custom_call.1} parent=5 // pred_fallthru
        _
      %p152 = scmp.lt.s32.totalorder %s13, 2
      // Predicated region
      $region21: #{tpu_custom_call.1} parent=5 // pred_check
        %p153 = pneg %p152
      $region22: #{tpu_custom_call.1} parent=5 // pred_check_branch
        %155 = sbr.rel (%p153) target = $region24
      $region23: #{tpu_custom_call.1} parent=5 // pred_region
        // Predicated region
        $region25: #{tpu_custom_call.1} parent=23 // pred_check
          %p156 = pneg %p45
        $region26: #{tpu_custom_call.1} parent=23 // pred_check_branch
          %158 = sbr.rel (%p156) target = $region28
        $region27: #{tpu_custom_call.1} parent=23 // pred_region
          %p159 = scmp.lt.s32.totalorder %s20, 1
          %s160 = scalar_select %p159, %s20, 1
          %s161 = smul.addr %s160, 3
          %s162 = smul.addr %s161, 4
          %s163 = scalar_lea.vmem %s0, %s162
        $region28: #{tpu_custom_call.1} parent=23 // pred_fallthru
          _
      $region24: #{tpu_custom_call.1} parent=5 // pred_fallthru
        _
      %p164 = scmp.le.s32.totalorder 1, %s13
      %p165 = scmp.lt.s32.totalorder %s13, 3
      %p166 = pnand %p164, %p165
      %p167 = pneg %p166
      // Predicated region
      $region29: #{tpu_custom_call.1} parent=5 // pred_check
        _
      $region30: #{tpu_custom_call.1} parent=5 // pred_check_branch
        %169 = sbr.rel (%p166) target = $region32
      $region31: #{tpu_custom_call.1} parent=5 // pred_region
        %s170 = ssub.s32 %s13, 1
        // Predicated region
        $region33: #{tpu_custom_call.1} parent=31 // pred_check
          %p171 = pneg %p93
        $region34: #{tpu_custom_call.1} parent=31 // pred_check_branch
          %173 = sbr.rel (%p171) target = $region36
        $region35: #{tpu_custom_call.1} parent=31 // pred_region
          %174 = dma.done [#allocation3], 384
        $region36: #{tpu_custom_call.1} parent=31 // pred_fallthru
          _
        %p175 = scmp.lt.s32.totalorder %s22, 1
        %s176 = scalar_select %p175, %s22, 1
        %s177 = smul.addr %s176, 3
        %s178 = smul.addr %s177, 4
        %s179 = scalar_lea.vmem %s0, %s178
        %p180 = pneg %p51
        %p181 = pneg %p48
        %p182 = pneg %p72
        %p183 = pneg %p69
        %p184 = pneg %p93
        %p185 = pneg %p90
        %p186 = pneg %p121
        %p187 = pneg %p118
        %s188 = sand.u32 %s108, 1
        %s189 = scalar_lea.sflag [#allocation4], %s188
        %s190 = sand.u32 %s108, 1
        %s191 = smul.addr %s190, 16
        %s192 = scalar_lea.vmem [#allocation5], %s191
        %p193 = scmp.lt.s32.totalorder %s22, 1
        %s194 = scalar_select %p193, %s22, 1
        %s195 = smul.addr %s194, 3
        %s196 = smul.addr %s195, 4
        %s197 = scalar_lea.vmem %s0, %s196
        %v198 = vld [vmem:[%s1] sm:$0xff]
        %v199 = vld [vmem:[%s1 + $0x8] sm:$0xff]
        %v200 = vld [vmem:[%s1 + $0x10] sm:$0xff]
        %v201 = vld [vmem:[%s1 + $0x18] sm:$0xff]
        %v202 = vld [vmem:[%s197] sm:$0xff]
        %v203 = vld [vmem:[%s197 + $0x8] sm:$0xf]
        %205 = vset.pattern.permute.xlu0 5
        %206 = vperm.xlu0 %205, %v198
        %v207 = vpop.permute.xlu0 %206
        %v209 = vunpack.c.l.s4 839922192
        %v210 = vunpack.c.0.s8 %v209
        %v211 = vlaneseq
        %v212 = vshrl.u32 %v211, 7
        %v213 = vsub.s32 %v210, %v212
        %v214 = vrot.slane %v207, %v213
        %v216 = vmul.f32 %v202, %v214
        %v217 = vmul.f32 %v203, %v214
        %218 = vset.pattern.permute.xlu0 6
        %219 = vperm.xlu0 %218, %v198
        %v220 = vpop.permute.xlu0 %219
        %v222 = vunpack.c.l.s4 839922192
        %v223 = vunpack.c.0.s8 %v222
        %v224 = vlaneseq
        %v225 = vshrl.u32 %v224, 7
        %v226 = vsub.s32 %v223, %v225
        %v227 = vrot.slane %v220, %v226
        %v229 = vadd.f32 %v216, %v227
        %v230 = vadd.f32 %v217, %v227
        %v231 = vmax.f32 %v229, 0.0
        %v232 = vmax.f32 %v230, 0.0
        %233 = vset.pattern.permute.xlu0 0
        %234 = vperm.xlu0 %233, %v198
        %v235 = vpop.permute.xlu0 %234
        %238 = vset.pattern.permute.xlu0 0
        %239 = vperm.xlu0 %238, %v199
        %v240 = vpop.permute.xlu0 %239
        %243 = vset.pattern.permute.xlu0 0
        %244 = vperm.xlu0 %243, %v200
        %v245 = vpop.permute.xlu0 %244
        %248 = vset.pattern.permute.xlu0 0
        %249 = vperm.xlu0 %248, %v201
        %v250 = vpop.permute.xlu0 %249
        %v254 = vlaneseq
        %v255 = vshrl.u32 %v254, 7
        %v256 = vsub.s32 0, %v255
        %v257 = vrot.slane %v231, %v256
        %v258 = vlaneseq
        %v259 = vshrl.u32 %v258, 7
        %v260 = vsub.s32 4, %v259
        %v261 = vrot.slane %v231, %v260
        %v262 = vlaneseq
        %v263 = vshrl.u32 %v262, 7
        %v264 = vsub.s32 0, %v263
        %v265 = vrot.slane %v232, %v264
        %v269 = vlaneseq
        %v270 = vshrl.u32 %v269, 7
        %v271 = vsub.s32 0, %v270
        %v272 = vrot.slane %v257, %v271
        %v273 = vlaneseq
        %v274 = vshrl.u32 %v273, 7
        %v275 = vsub.s32 0, %v274
        %v276 = vrot.slane %v261, %v275
        %v277 = vlaneseq
        %v278 = vshrl.u32 %v277, 7
        %v279 = vsub.s32 0, %v278
        %v280 = vrot.slane %v265, %v279
        %v281 = vmul.f32 %v235, %v272
        %v282 = vmul.f32 %v235, %v276
        %v283 = vmul.f32 %v235, %v280
        %v284 = vmul.f32 %v240, %v272
        %v285 = vmul.f32 %v240, %v276
        %v286 = vmul.f32 %v240, %v280
        %v287 = vmul.f32 %v245, %v272
        %v288 = vmul.f32 %v245, %v276
        %v289 = vmul.f32 %v245, %v280
        %v290 = vmul.f32 %v250, %v272
        %v291 = vmul.f32 %v250, %v276
        %v292 = vmul.f32 %v250, %v280
        %v293 = vadd.f32 %v281, 0.0
        %v294 = vadd.f32 %v282, 0.0
        %v295 = vadd.f32 %v283, 0.0
        %v296 = vadd.f32 %v284, 0.0
        %v297 = vadd.f32 %v285, 0.0
        %v298 = vadd.f32 %v286, 0.0
        %v299 = vadd.f32 %v287, 0.0
        %v300 = vadd.f32 %v288, 0.0
        %v301 = vadd.f32 %v289, 0.0
        %v302 = vadd.f32 %v290, 0.0
        %v303 = vadd.f32 %v291, 0.0
        %v304 = vadd.f32 %v292, 0.0
        %305 = vset.pattern.permute.xlu0 1
        %306 = vperm.xlu0 %305, %v198
        %v307 = vpop.permute.xlu0 %306
        %309 = vset.pattern.permute.xlu0 1
        %310 = vperm.xlu0 %309, %v199
        %v311 = vpop.permute.xlu0 %310
        %313 = vset.pattern.permute.xlu0 1
        %314 = vperm.xlu0 %313, %v200
        %v315 = vpop.permute.xlu0 %314
        %317 = vset.pattern.permute.xlu0 1
        %318 = vperm.xlu0 %317, %v201
        %v319 = vpop.permute.xlu0 %318
        %v321 = vlaneseq
        %v322 = vshrl.u32 %v321, 7
        %v323 = vsub.s32 1, %v322
        %v324 = vrot.slane %v231, %v323
        %v325 = vlaneseq
        %v326 = vshrl.u32 %v325, 7
        %v327 = vsub.s32 5, %v326
        %v328 = vrot.slane %v231, %v327
        %v329 = vlaneseq
        %v330 = vshrl.u32 %v329, 7
        %v331 = vsub.s32 1, %v330
        %v332 = vrot.slane %v232, %v331
        %v336 = vlaneseq
        %v337 = vshrl.u32 %v336, 7
        %v338 = vsub.s32 1, %v337
        %v339 = vrot.slane %v324, %v338
        %v340 = vlaneseq
        %v341 = vshrl.u32 %v340, 7
        %v342 = vsub.s32 1, %v341
        %v343 = vrot.slane %v328, %v342
        %v344 = vlaneseq
        %v345 = vshrl.u32 %v344, 7
        %v346 = vsub.s32 1, %v345
        %v347 = vrot.slane %v332, %v346
        %v348 = vmul.f32 %v307, %v339
        %v349 = vmul.f32 %v307, %v343
        %v350 = vmul.f32 %v307, %v347
        %v351 = vmul.f32 %v311, %v339
        %v352 = vmul.f32 %v311, %v343
        %v353 = vmul.f32 %v311, %v347
        %v354 = vmul.f32 %v315, %v339
        %v355 = vmul.f32 %v315, %v343
        %v356 = vmul.f32 %v315, %v347
        %v357 = vmul.f32 %v319, %v339
        %v358 = vmul.f32 %v319, %v343
        %v359 = vmul.f32 %v319, %v347
        %v360 = vadd.f32 %v293, %v348
        %v361 = vadd.f32 %v294, %v349
        %v362 = vadd.f32 %v295, %v350
        %v363 = vadd.f32 %v296, %v351
        %v364 = vadd.f32 %v297, %v352
        %v365 = vadd.f32 %v298, %v353
        %v366 = vadd.f32 %v299, %v354
        %v367 = vadd.f32 %v300, %v355
        %v368 = vadd.f32 %v301, %v356
        %v369 = vadd.f32 %v302, %v357
        %v370 = vadd.f32 %v303, %v358
        %v371 = vadd.f32 %v304, %v359
        %372 = vset.pattern.permute.xlu0 2
        %373 = vperm.xlu0 %372, %v198
        %v374 = vpop.permute.xlu0 %373
        %376 = vset.pattern.permute.xlu0 2
        %377 = vperm.xlu0 %376, %v199
        %v378 = vpop.permute.xlu0 %377
        %380 = vset.pattern.permute.xlu0 2
        %381 = vperm.xlu0 %380, %v200
        %v382 = vpop.permute.xlu0 %381
        %384 = vset.pattern.permute.xlu0 2
        %385 = vperm.xlu0 %384, %v201
        %v386 = vpop.permute.xlu0 %385
        %v388 = vlaneseq
        %v389 = vshrl.u32 %v388, 7
        %v390 = vsub.s32 2, %v389
        %v391 = vrot.slane %v231, %v390
        %v392 = vlaneseq
        %v393 = vshrl.u32 %v392, 7
        %v394 = vsub.s32 6, %v393
        %v395 = vrot.slane %v231, %v394
        %v396 = vlaneseq
        %v397 = vshrl.u32 %v396, 7
        %v398 = vsub.s32 2, %v397
        %v399 = vrot.slane %v232, %v398
        %v403 = vlaneseq
        %v404 = vshrl.u32 %v403, 7
        %v405 = vsub.s32 2, %v404
        %v406 = vrot.slane %v391, %v405
        %v407 = vlaneseq
        %v408 = vshrl.u32 %v407, 7
        %v409 = vsub.s32 2, %v408
        %v410 = vrot.slane %v395, %v409
        %v411 = vlaneseq
        %v412 = vshrl.u32 %v411, 7
        %v413 = vsub.s32 2, %v412
        %v414 = vrot.slane %v399, %v413
        %v415 = vmul.f32 %v374, %v406
        %v416 = vmul.f32 %v374, %v410
        %v417 = vmul.f32 %v374, %v414
        %v418 = vmul.f32 %v378, %v406
        %v419 = vmul.f32 %v378, %v410
        %v420 = vmul.f32 %v378, %v414
        %v421 = vmul.f32 %v382, %v406
        %v422 = vmul.f32 %v382, %v410
        %v423 = vmul.f32 %v382, %v414
        %v424 = vmul.f32 %v386, %v406
        %v425 = vmul.f32 %v386, %v410
        %v426 = vmul.f32 %v386, %v414
        %v427 = vadd.f32 %v360, %v415
        %v428 = vadd.f32 %v361, %v416
        %v429 = vadd.f32 %v362, %v417
        %v430 = vadd.f32 %v363, %v418
        %v431 = vadd.f32 %v364, %v419
        %v432 = vadd.f32 %v365, %v420
        %v433 = vadd.f32 %v366, %v421
        %v434 = vadd.f32 %v367, %v422
        %v435 = vadd.f32 %v368, %v423
        %v436 = vadd.f32 %v369, %v424
        %v437 = vadd.f32 %v370, %v425
        %v438 = vadd.f32 %v371, %v426
        %439 = vset.pattern.permute.xlu0 3
        %440 = vperm.xlu0 %439, %v198
        %v441 = vpop.permute.xlu0 %440
        %443 = vset.pattern.permute.xlu0 3
        %444 = vperm.xlu0 %443, %v199
        %v445 = vpop.permute.xlu0 %444
        %447 = vset.pattern.permute.xlu0 3
        %448 = vperm.xlu0 %447, %v200
        %v449 = vpop.permute.xlu0 %448
        %451 = vset.pattern.permute.xlu0 3
        %452 = vperm.xlu0 %451, %v201
        %v453 = vpop.permute.xlu0 %452
        %v455 = vlaneseq
        %v456 = vshrl.u32 %v455, 7
        %v457 = vsub.s32 3, %v456
        %v458 = vrot.slane %v231, %v457
        %v459 = vlaneseq
        %v460 = vshrl.u32 %v459, 7
        %v461 = vsub.s32 7, %v460
        %v462 = vrot.slane %v231, %v461
        %v463 = vlaneseq
        %v464 = vshrl.u32 %v463, 7
        %v465 = vsub.s32 3, %v464
        %v466 = vrot.slane %v232, %v465
        %v470 = vlaneseq
        %v471 = vshrl.u32 %v470, 7
        %v472 = vsub.s32 3, %v471
        %v473 = vrot.slane %v458, %v472
        %v474 = vlaneseq
        %v475 = vshrl.u32 %v474, 7
        %v476 = vsub.s32 3, %v475
        %v477 = vrot.slane %v462, %v476
        %v478 = vlaneseq
        %v479 = vshrl.u32 %v478, 7
        %v480 = vsub.s32 3, %v479
        %v481 = vrot.slane %v466, %v480
        %v482 = vmul.f32 %v441, %v473
        %v483 = vmul.f32 %v441, %v477
        %v484 = vmul.f32 %v441, %v481
        %v485 = vmul.f32 %v445, %v473
        %v486 = vmul.f32 %v445, %v477
        %v487 = vmul.f32 %v445, %v481
        %v488 = vmul.f32 %v449, %v473
        %v489 = vmul.f32 %v449, %v477
        %v490 = vmul.f32 %v449, %v481
        %v491 = vmul.f32 %v453, %v473
        %v492 = vmul.f32 %v453, %v477
        %v493 = vmul.f32 %v453, %v481
        %v494 = vadd.f32 %v427, %v482
        %v495 = vadd.f32 %v428, %v483
        %v496 = vadd.f32 %v429, %v484
        %v497 = vadd.f32 %v430, %v485
        %v498 = vadd.f32 %v431, %v486
        %v499 = vadd.f32 %v432, %v487
        %v500 = vadd.f32 %v433, %v488
        %v501 = vadd.f32 %v434, %v489
        %v502 = vadd.f32 %v435, %v490
        %v503 = vadd.f32 %v436, %v491
        %v504 = vadd.f32 %v437, %v492
        %v505 = vadd.f32 %v438, %v493
        %506 = vset.pattern.permute.xlu0 4
        %507 = vperm.xlu0 %506, %v198
        %v508 = vpop.permute.xlu0 %507
        %510 = vset.pattern.permute.xlu0 4
        %511 = vperm.xlu0 %510, %v199
        %v512 = vpop.permute.xlu0 %511
        %514 = vset.pattern.permute.xlu0 4
        %515 = vperm.xlu0 %514, %v200
        %v516 = vpop.permute.xlu0 %515
        %518 = vset.pattern.permute.xlu0 4
        %519 = vperm.xlu0 %518, %v201
        %v520 = vpop.permute.xlu0 %519
        %v522 = vadd.f32 %v494, %v508
        %v523 = vadd.f32 %v495, %v508
        %v524 = vadd.f32 %v496, %v508
        %v525 = vadd.f32 %v497, %v512
        %v526 = vadd.f32 %v498, %v512
        %v527 = vadd.f32 %v499, %v512
        %v528 = vadd.f32 %v500, %v516
        %v529 = vadd.f32 %v501, %v516
        %v530 = vadd.f32 %v502, %v516
        %v531 = vadd.f32 %v503, %v520
        %v532 = vadd.f32 %v504, %v520
        %v533 = vadd.f32 %v505, %v520
        %v534 = vmax.f32 %v522, 0.0
        %v535 = vmax.f32 %v523, 0.0
        %v536 = vmax.f32 %v524, 0.0
        %v537 = vmax.f32 %v525, 0.0
        %v538 = vmax.f32 %v526, 0.0
        %v539 = vmax.f32 %v527, 0.0
        %v540 = vmax.f32 %v528, 0.0
        %v541 = vmax.f32 %v529, 0.0
        %v542 = vmax.f32 %v530, 0.0
        %v543 = vmax.f32 %v531, 0.0
        %v544 = vmax.f32 %v532, 0.0
        %v545 = vmax.f32 %v533, 0.0
        %v546 = vlaneseq
        %v547 = vand.u32 %v546, 127
        %v548 = vadd.s32 %v547, 128
        %v549 = vadd.s32 %v547, 256
        %s550 = smul.u32 %s23, 256
        %v551 = vstv %s550
        %v552 = vadd.s32 %v551, %v547
        %v553 = vadd.s32 %v551, %v548
        %v554 = vadd.s32 %v551, %v549
        %v555 = vsub.s32 %v552, 1
        %v556 = vsub.s32 %v553, 1
        %v557 = vsub.s32 %v554, 1
        %vm558 = vcmp.ge.s32.totalorder %v555, 16
        %vm559 = vcmp.ge.s32.totalorder %v556, 16
        %vm560 = vcmp.ge.s32.totalorder %v557, 16
        %vm561 = vcmp.lt.s32.totalorder %v555, 272
        %vm562 = vcmp.lt.s32.totalorder %v556, 272
        %vm563 = vcmp.lt.s32.totalorder %v557, 272
        %vm564 = vmand %vm558, %vm561
        %vm565 = vmand %vm559, %vm562
        %vm566 = vmand %vm560, %vm563
        %v567 = vsel %vm564, 1, 0
        %v568 = vsel %vm565, 1, 0
        %v569 = vsel %vm566, 1, 0
        %vm570 = vcmp.eq.s32.totalorder %v567, 1
        %vm571 = vcmp.eq.s32.totalorder %v568, 1
        %vm572 = vcmp.eq.s32.totalorder %v569, 1
        %v573 = vsel %vm570, %v534, 0.0
        %v574 = vsel %vm571, %v535, 0.0
        %v575 = vsel %vm572, %v536, 0.0
        %v576 = vsel %vm570, %v537, 0.0
        %v577 = vsel %vm571, %v538, 0.0
        %v578 = vsel %vm572, %v539, 0.0
        %v579 = vsel %vm570, %v540, 0.0
        %v580 = vsel %vm571, %v541, 0.0
        %v581 = vsel %vm572, %v542, 0.0
        %v582 = vsel %vm570, %v543, 0.0
        %v583 = vsel %vm571, %v544, 0.0
        %v584 = vsel %vm572, %v545, 0.0
        %vm585 = vcmp.lt.s32.totalorder %v547, 0
        %v586 = vsub.s32 0, %v547
        %v587 = vsel %vm585, %v586, %v547
        %v588 = vshrl.u32 %v587, 4
        %v589 = vand.u32 %v587, 15
        %v590 = vsub.s32 0, %v589
        %v591 = vsel %vm585, %v590, %v589
        %vm592 = vcmp.lt.s32.totalorder %v548, 0
        %v593 = vsub.s32 0, %v548
        %v594 = vsel %vm592, %v593, %v548
        %v595 = vshrl.u32 %v594, 4
        %v596 = vand.u32 %v594, 15
        %v597 = vsub.s32 0, %v596
        %v598 = vsel %vm592, %v597, %v596
        %vm599 = vcmp.ne.s32.totalorder %v591, 0
        %vm600 = vcmp.ne.s32.totalorder %v598, 0
        %vm601 = vcmp.lt.s32.totalorder %v591, 0
        %vm602 = vcmp.lt.s32.totalorder %v598, 0
        %vm603 = vmand %vm601, %vm599
        %vm604 = vmand %vm602, %vm600
        %v605 = vadd.s32 %v591, 16
        %v606 = vadd.s32 %v598, 16
        %v607 = vsel %vm603, %v605, %v591
        %v608 = vsel %vm604, %v606, %v598
        %vm609 = vcmp.ne.s32.totalorder %v607, 0
        %vm610 = vcmp.ne.s32.totalorder %v608, 0
        %vm611 = vcmp.ne.s32.totalorder %v607, 15
        %vm612 = vcmp.ne.s32.totalorder %v608, 15
        %v613 = vld [vmem:[#allocation2] sm:$0xff]
        %v614 = vld [vmem:[#allocation2 + $0x8] sm:$0xff]
        %v615 = vld [vmem:[#allocation2 + $0x10] sm:$0xff]
        %v616 = vsel %vm609, 1, 0
        %v617 = vsel %vm610, 1, 0
        %vm618 = vcmp.eq.s32.totalorder %v616, 1
        %vm619 = vcmp.eq.s32.totalorder %v617, 1
        %v620 = vsel %vm618, %v573, 0.0
        %v621 = vsel %vm619, %v574, 0.0
        %v622 = vsel %vm618, %v576, 0.0
        %v623 = vsel %vm619, %v577, 0.0
        %v624 = vsel %vm618, %v579, 0.0
        %v625 = vsel %vm619, %v580, 0.0
        %v626 = vsel %vm618, %v582, 0.0
        %v627 = vsel %vm619, %v583, 0.0
        %v628 = vsel %vm611, 1, 0
        %v629 = vsel %vm612, 1, 0
        %vm630 = vcmp.eq.s32.totalorder %v628, 1
        %vm631 = vcmp.eq.s32.totalorder %v629, 1
        %644 = vrot.lane.b32.xlu0 %v573, 126
        %v645 = vpop.permute.xlu0 %644
        %646 = vrot.lane.b32.xlu0 %v574, 126
        %v647 = vpop.permute.xlu0 %646
        %648 = vrot.lane.b32.xlu0 %v575, 126
        %v649 = vpop.permute.xlu0 %648
        %650 = vrot.lane.b32.xlu0 %v576, 126
        %v651 = vpop.permute.xlu0 %650
        %652 = vrot.lane.b32.xlu0 %v577, 126
        %v653 = vpop.permute.xlu0 %652
        %654 = vrot.lane.b32.xlu0 %v578, 126
        %v655 = vpop.permute.xlu0 %654
        %656 = vrot.lane.b32.xlu0 %v579, 126
        %v657 = vpop.permute.xlu0 %656
        %658 = vrot.lane.b32.xlu0 %v580, 126
        %v659 = vpop.permute.xlu0 %658
        %660 = vrot.lane.b32.xlu0 %v581, 126
        %v661 = vpop.permute.xlu0 %660
        %662 = vrot.lane.b32.xlu0 %v582, 126
        %v663 = vpop.permute.xlu0 %662
        %664 = vrot.lane.b32.xlu0 %v583, 126
        %v665 = vpop.permute.xlu0 %664
        %666 = vrot.lane.b32.xlu0 %v584, 126
        %v667 = vpop.permute.xlu0 %666
        %vm668 = vcmask 1031168
        %v669 = vsel %vm668, %v645, %v647
        %v670 = vsel %vm668, %v647, %v649
        %v671 = vsel %vm668, %v651, %v653
        %v672 = vsel %vm668, %v653, %v655
        %v673 = vsel %vm668, %v657, %v659
        %v674 = vsel %vm668, %v659, %v661
        %v675 = vsel %vm668, %v663, %v665
        %v676 = vsel %vm668, %v665, %v667
        %v685 = vsel %vm630, %v669, 0.0
        %v686 = vsel %vm631, %v670, 0.0
        %v687 = vsel %vm630, %v671, 0.0
        %v688 = vsel %vm631, %v672, 0.0
        %v689 = vsel %vm630, %v673, 0.0
        %v690 = vsel %vm631, %v674, 0.0
        %v691 = vsel %vm630, %v675, 0.0
        %v692 = vsel %vm631, %v676, 0.0
        %693 = vrot.lane.b32.xlu0 %v573, 127
        %v694 = vpop.permute.xlu0 %693
        %695 = vrot.lane.b32.xlu0 %v574, 127
        %v696 = vpop.permute.xlu0 %695
        %697 = vrot.lane.b32.xlu0 %v575, 127
        %v698 = vpop.permute.xlu0 %697
        %699 = vrot.lane.b32.xlu0 %v576, 127
        %v700 = vpop.permute.xlu0 %699
        %701 = vrot.lane.b32.xlu0 %v577, 127
        %v702 = vpop.permute.xlu0 %701
        %703 = vrot.lane.b32.xlu0 %v578, 127
        %v704 = vpop.permute.xlu0 %703
        %705 = vrot.lane.b32.xlu0 %v579, 127
        %v706 = vpop.permute.xlu0 %705
        %707 = vrot.lane.b32.xlu0 %v580, 127
        %v708 = vpop.permute.xlu0 %707
        %709 = vrot.lane.b32.xlu0 %v581, 127
        %v710 = vpop.permute.xlu0 %709
        %711 = vrot.lane.b32.xlu0 %v582, 127
        %v712 = vpop.permute.xlu0 %711
        %713 = vrot.lane.b32.xlu0 %v583, 127
        %v714 = vpop.permute.xlu0 %713
        %715 = vrot.lane.b32.xlu0 %v584, 127
        %v716 = vpop.permute.xlu0 %715
        %vm717 = vcmask 1039360
        %v718 = vsel %vm717, %v694, %v696
        %v719 = vsel %vm717, %v696, %v698
        %v720 = vsel %vm717, %v700, %v702
        %v721 = vsel %vm717, %v702, %v704
        %v722 = vsel %vm717, %v706, %v708
        %v723 = vsel %vm717, %v708, %v710
        %v724 = vsel %vm717, %v712, %v714
        %v725 = vsel %vm717, %v714, %v716
        %734 = vrot.lane.b32.xlu0 %v573, 112
        %v735 = vpop.permute.xlu0 %734
        %736 = vrot.lane.b32.xlu0 %v574, 112
        %v737 = vpop.permute.xlu0 %736
        %738 = vrot.lane.b32.xlu0 %v575, 112
        %v739 = vpop.permute.xlu0 %738
        %740 = vrot.lane.b32.xlu0 %v576, 112
        %v741 = vpop.permute.xlu0 %740
        %742 = vrot.lane.b32.xlu0 %v577, 112
        %v743 = vpop.permute.xlu0 %742
        %744 = vrot.lane.b32.xlu0 %v578, 112
        %v745 = vpop.permute.xlu0 %744
        %746 = vrot.lane.b32.xlu0 %v579, 112
        %v747 = vpop.permute.xlu0 %746
        %748 = vrot.lane.b32.xlu0 %v580, 112
        %v749 = vpop.permute.xlu0 %748
        %750 = vrot.lane.b32.xlu0 %v581, 112
        %v751 = vpop.permute.xlu0 %750
        %752 = vrot.lane.b32.xlu0 %v582, 112
        %v753 = vpop.permute.xlu0 %752
        %754 = vrot.lane.b32.xlu0 %v583, 112
        %v755 = vpop.permute.xlu0 %754
        %756 = vrot.lane.b32.xlu0 %v584, 112
        %v757 = vpop.permute.xlu0 %756
        %vm758 = vcmask 916480
        %v759 = vsel %vm758, %v735, %v737
        %v760 = vsel %vm758, %v737, %v739
        %v761 = vsel %vm758, %v741, %v743
        %v762 = vsel %vm758, %v743, %v745
        %v763 = vsel %vm758, %v747, %v749
        %v764 = vsel %vm758, %v749, %v751
        %v765 = vsel %vm758, %v753, %v755
        %v766 = vsel %vm758, %v755, %v757
        %v775 = vsel %vm618, %v759, 0.0
        %v776 = vsel %vm619, %v760, 0.0
        %v777 = vsel %vm618, %v761, 0.0
        %v778 = vsel %vm619, %v762, 0.0
        %v779 = vsel %vm618, %v763, 0.0
        %v780 = vsel %vm619, %v764, 0.0
        %v781 = vsel %vm618, %v765, 0.0
        %v782 = vsel %vm619, %v766, 0.0
        %783 = vrot.lane.b32.xlu0 %v573, 110
        %v784 = vpop.permute.xlu0 %783
        %785 = vrot.lane.b32.xlu0 %v574, 110
        %v786 = vpop.permute.xlu0 %785
        %787 = vrot.lane.b32.xlu0 %v575, 110
        %v788 = vpop.permute.xlu0 %787
        %789 = vrot.lane.b32.xlu0 %v576, 110
        %v790 = vpop.permute.xlu0 %789
        %791 = vrot.lane.b32.xlu0 %v577, 110
        %v792 = vpop.permute.xlu0 %791
        %793 = vrot.lane.b32.xlu0 %v578, 110
        %v794 = vpop.permute.xlu0 %793
        %795 = vrot.lane.b32.xlu0 %v579, 110
        %v796 = vpop.permute.xlu0 %795
        %797 = vrot.lane.b32.xlu0 %v580, 110
        %v798 = vpop.permute.xlu0 %797
        %799 = vrot.lane.b32.xlu0 %v581, 110
        %v800 = vpop.permute.xlu0 %799
        %801 = vrot.lane.b32.xlu0 %v582, 110
        %v802 = vpop.permute.xlu0 %801
        %803 = vrot.lane.b32.xlu0 %v583, 110
        %v804 = vpop.permute.xlu0 %803
        %805 = vrot.lane.b32.xlu0 %v584, 110
        %v806 = vpop.permute.xlu0 %805
        %vm807 = vcmask 900096
        %v808 = vsel %vm807, %v784, %v786
        %v809 = vsel %vm807, %v786, %v788
        %v810 = vsel %vm807, %v790, %v792
        %v811 = vsel %vm807, %v792, %v794
        %v812 = vsel %vm807, %v796, %v798
        %v813 = vsel %vm807, %v798, %v800
        %v814 = vsel %vm807, %v802, %v804
        %v815 = vsel %vm807, %v804, %v806
        %v824 = vsel %vm630, %v808, 0.0
        %v825 = vsel %vm631, %v809, 0.0
        %v826 = vsel %vm630, %v810, 0.0
        %v827 = vsel %vm631, %v811, 0.0
        %v828 = vsel %vm630, %v812, 0.0
        %v829 = vsel %vm631, %v813, 0.0
        %v830 = vsel %vm630, %v814, 0.0
        %v831 = vsel %vm631, %v815, 0.0
        %832 = vrot.lane.b32.xlu0 %v573, 111
        %v833 = vpop.permute.xlu0 %832
        %834 = vrot.lane.b32.xlu0 %v574, 111
        %v835 = vpop.permute.xlu0 %834
        %836 = vrot.lane.b32.xlu0 %v575, 111
        %v837 = vpop.permute.xlu0 %836
        %838 = vrot.lane.b32.xlu0 %v576, 111
        %v839 = vpop.permute.xlu0 %838
        %840 = vrot.lane.b32.xlu0 %v577, 111
        %v841 = vpop.permute.xlu0 %840
        %842 = vrot.lane.b32.xlu0 %v578, 111
        %v843 = vpop.permute.xlu0 %842
        %844 = vrot.lane.b32.xlu0 %v579, 111
        %v845 = vpop.permute.xlu0 %844
        %846 = vrot.lane.b32.xlu0 %v580, 111
        %v847 = vpop.permute.xlu0 %846
        %848 = vrot.lane.b32.xlu0 %v581, 111
        %v849 = vpop.permute.xlu0 %848
        %850 = vrot.lane.b32.xlu0 %v582, 111
        %v851 = vpop.permute.xlu0 %850
        %852 = vrot.lane.b32.xlu0 %v583, 111
        %v853 = vpop.permute.xlu0 %852
        %854 = vrot.lane.b32.xlu0 %v584, 111
        %v855 = vpop.permute.xlu0 %854
        %vm856 = vcmask 908288
        %v857 = vsel %vm856, %v833, %v835
        %v858 = vsel %vm856, %v835, %v837
        %v859 = vsel %vm856, %v839, %v841
        %v860 = vsel %vm856, %v841, %v843
        %v861 = vsel %vm856, %v845, %v847
        %v862 = vsel %vm856, %v847, %v849
        %v863 = vsel %vm856, %v851, %v853
        %v864 = vsel %vm856, %v853, %v855
        %vm873 = vcmask 785408
        %v875 = vsel %vm873, %v614, 0
        %877 = vmatprep.subr.mxu0 %v776
        %878 = vmatpush1.msra.mxu0 %v775
        %879 = vmatprep.subr.mxu0 %v778
        %880 = vmatpush1.msra.mxu0 %v777
        %881 = vmatprep.subr.mxu0 %v780
        %882 = vmatpush1.msra.mxu0 %v779
        %883 = vmatprep.subr.mxu0 %v782
        %884 = vmatpush1.msra.mxu0 %v781
        %885 = vmatprep.subr.mxu0 %v858
        %886 = vmatpush1.msra.mxu0 %v857
        %887 = vmatprep.subr.mxu0 %v860
        %888 = vmatpush1.msra.mxu0 %v859
        %889 = vmatprep.subr.mxu0 %v862
        %890 = vmatpush1.msra.mxu0 %v861
        %891 = vmatprep.subr.mxu0 %v864
        %892 = vmatpush1.msra.mxu0 %v863
        %893 = vmatprep.subr.mxu0 %v825
        %894 = vmatpush1.msra.mxu0 %v824
        %895 = vmatprep.subr.mxu0 %v827
        %896 = vmatpush1.msra.mxu0 %v826
        %897 = vmatprep.subr.mxu0 %v829
        %898 = vmatpush1.msra.mxu0 %v828
        %899 = vmatprep.subr.mxu0 %v831
        %900 = vmatpush1.msra.mxu0 %v830
        %901 = vmatprep.subr.mxu0 0.0
        %902 = vmatpush1.msra.mxu0 0.0
        %903 = vmatprep.subr.mxu0 0.0
        %904 = vmatpush1.msra.mxu0 0.0
        %905 = vmatprep.subr.mxu0 0.0
        %906 = vmatpush1.msra.mxu0 0.0
        %907 = vmatprep.subr.mxu0 0.0
        %908 = vmatpush1.msra.mxu0 0.0
        %909 = vmatprep.subr.mxu0 0.0
        %910 = vmatpush1.msra.mxu0 0.0
        %911 = vmatprep.subr.mxu0 0.0
        %912 = vmatpush1.msra.mxu0 0.0
        %913 = vmatprep.subr.mxu0 0.0
        %914 = vmatpush1.msra.mxu0 0.0
        %915 = vmatprep.subr.mxu0 0.0
        %916 = vmatpush1.msra.mxu0 0.0
        %917 = vmatprep.subr.mxu0 0.0
        %918 = vmatpush1.msra.mxu0 0.0
        %919 = vmatprep.subr.mxu0 0.0
        %920 = vmatpush1.msra.mxu0 0.0
        %921 = vmatprep.subr.mxu0 0.0
        %922 = vmatpush1.msra.mxu0 0.0
        %923 = vmatprep.subr.mxu0 0.0
        %924 = vmatpush1.msra.mxu0 0.0
        %925 = vmatprep.subr.mxu0 0.0
        %926 = vmatpush1.msra.mxu0 0.0
        %927 = vmatprep.subr.mxu0 0.0
        %928 = vmatpush1.msra.mxu0 0.0
        %929 = vmatprep.subr.mxu0 0.0
        %930 = vmatpush1.msra.mxu0 0.0
        %931 = vmatprep.subr.mxu0 0.0
        %932 = vmatpush1.msra.mxu0 0.0
        %933 = vmatprep.subr.mxu0 0.0
        %934 = vmatpush1.msra.mxu0 0.0
        %935 = vmatprep.subr.mxu0 0.0
        %936 = vmatpush1.msra.mxu0 0.0
        %937 = vmatprep.subr.mxu0 0.0
        %938 = vmatpush1.msra.mxu0 0.0
        %939 = vmatprep.subr.mxu0 0.0
        %940 = vmatpush1.msra.mxu0 0.0
        %941 = vmatprep.mubr.f32.mxu0 0.0
        %942 = vmatmul.mubr.f32.gmra.mrb[0].mxu0 %v875
        %v943 = vpop.f32.mrb[0].mxu0
        %v944 = vadd.f32 0.0, %v943
        %v945 = vpop.f32.mrb[0].mxu0
        %v946 = vadd.f32 0.0, %v945
        %947 = vdwg.mxu0
        %v949 = vsel %vm873, %v613, 0
        %951 = vmatprep.subr.mxu0 %v621
        %952 = vmatpush1.msra.mxu0 %v620
        %953 = vmatprep.subr.mxu0 %v623
        %954 = vmatpush1.msra.mxu0 %v622
        %955 = vmatprep.subr.mxu0 %v625
        %956 = vmatpush1.msra.mxu0 %v624
        %957 = vmatprep.subr.mxu0 %v627
        %958 = vmatpush1.msra.mxu0 %v626
        %959 = vmatprep.subr.mxu0 %v719
        %960 = vmatpush1.msra.mxu0 %v718
        %961 = vmatprep.subr.mxu0 %v721
        %962 = vmatpush1.msra.mxu0 %v720
        %963 = vmatprep.subr.mxu0 %v723
        %964 = vmatpush1.msra.mxu0 %v722
        %965 = vmatprep.subr.mxu0 %v725
        %966 = vmatpush1.msra.mxu0 %v724
        %967 = vmatprep.subr.mxu0 %v686
        %968 = vmatpush1.msra.mxu0 %v685
        %969 = vmatprep.subr.mxu0 %v688
        %970 = vmatpush1.msra.mxu0 %v687
        %971 = vmatprep.subr.mxu0 %v690
        %972 = vmatpush1.msra.mxu0 %v689
        %973 = vmatprep.subr.mxu0 %v692
        %974 = vmatpush1.msra.mxu0 %v691
        %975 = vmatprep.subr.mxu0 0.0
        %976 = vmatpush1.msra.mxu0 0.0
        %977 = vmatprep.subr.mxu0 0.0
        %978 = vmatpush1.msra.mxu0 0.0
        %979 = vmatprep.subr.mxu0 0.0
        %980 = vmatpush1.msra.mxu0 0.0
        %981 = vmatprep.subr.mxu0 0.0
        %982 = vmatpush1.msra.mxu0 0.0
        %983 = vmatprep.subr.mxu0 0.0
        %984 = vmatpush1.msra.mxu0 0.0
        %985 = vmatprep.subr.mxu0 0.0
        %986 = vmatpush1.msra.mxu0 0.0
        %987 = vmatprep.subr.mxu0 0.0
        %988 = vmatpush1.msra.mxu0 0.0
        %989 = vmatprep.subr.mxu0 0.0
        %990 = vmatpush1.msra.mxu0 0.0
        %991 = vmatprep.subr.mxu0 0.0
        %992 = vmatpush1.msra.mxu0 0.0
        %993 = vmatprep.subr.mxu0 0.0
        %994 = vmatpush1.msra.mxu0 0.0
        %995 = vmatprep.subr.mxu0 0.0
        %996 = vmatpush1.msra.mxu0 0.0
        %997 = vmatprep.subr.mxu0 0.0
        %998 = vmatpush1.msra.mxu0 0.0
        %999 = vmatprep.subr.mxu0 0.0
        %1000 = vmatpush1.msra.mxu0 0.0
        %1001 = vmatprep.subr.mxu0 0.0
        %1002 = vmatpush1.msra.mxu0 0.0
        %1003 = vmatprep.subr.mxu0 0.0
        %1004 = vmatpush1.msra.mxu0 0.0
        %1005 = vmatprep.subr.mxu0 0.0
        %1006 = vmatpush1.msra.mxu0 0.0
        %1007 = vmatprep.subr.mxu0 0.0
        %1008 = vmatpush1.msra.mxu0 0.0
        %1009 = vmatprep.subr.mxu0 0.0
        %1010 = vmatpush1.msra.mxu0 0.0
        %1011 = vmatprep.subr.mxu0 0.0
        %1012 = vmatpush1.msra.mxu0 0.0
        %1013 = vmatprep.subr.mxu0 0.0
        %1014 = vmatpush1.msra.mxu0 0.0
        %1015 = vmatprep.mubr.f32.mxu0 0.0
        %1016 = vmatmul.mubr.f32.gmra.mrb[0].mxu0 %v949
        %v1017 = vpop.f32.mrb[0].mxu0
        %v1018 = vadd.f32 %v944, %v1017
        %v1019 = vpop.f32.mrb[0].mxu0
        %v1020 = vadd.f32 %v946, %v1019
        %1021 = vdwg.mxu0
        %1022 = vrot.lane.b32.xlu0 %v573, 96
        %v1023 = vpop.permute.xlu0 %1022
        %1024 = vrot.lane.b32.xlu0 %v574, 96
        %v1025 = vpop.permute.xlu0 %1024
        %1026 = vrot.lane.b32.xlu0 %v575, 96
        %v1027 = vpop.permute.xlu0 %1026
        %1028 = vrot.lane.b32.xlu0 %v576, 96
        %v1029 = vpop.permute.xlu0 %1028
        %1030 = vrot.lane.b32.xlu0 %v577, 96
        %v1031 = vpop.permute.xlu0 %1030
        %1032 = vrot.lane.b32.xlu0 %v578, 96
        %v1033 = vpop.permute.xlu0 %1032
        %1034 = vrot.lane.b32.xlu0 %v579, 96
        %v1035 = vpop.permute.xlu0 %1034
        %1036 = vrot.lane.b32.xlu0 %v580, 96
        %v1037 = vpop.permute.xlu0 %1036
        %1038 = vrot.lane.b32.xlu0 %v581, 96
        %v1039 = vpop.permute.xlu0 %1038
        %1040 = vrot.lane.b32.xlu0 %v582, 96
        %v1041 = vpop.permute.xlu0 %1040
        %1042 = vrot.lane.b32.xlu0 %v583, 96
        %v1043 = vpop.permute.xlu0 %1042
        %1044 = vrot.lane.b32.xlu0 %v584, 96
        %v1045 = vpop.permute.xlu0 %1044
        %v1046 = vsel %vm873, %v1023, %v1025
        %v1047 = vsel %vm873, %v1025, %v1027
        %v1048 = vsel %vm873, %v1029, %v1031
        %v1049 = vsel %vm873, %v1031, %v1033
        %v1050 = vsel %vm873, %v1035, %v1037
        %v1051 = vsel %vm873, %v1037, %v1039
        %v1052 = vsel %vm873, %v1041, %v1043
        %v1053 = vsel %vm873, %v1043, %v1045
        %v1062 = vsel %vm618, %v1046, 0.0
        %v1063 = vsel %vm619, %v1047, 0.0
        %v1064 = vsel %vm618, %v1048, 0.0
        %v1065 = vsel %vm619, %v1049, 0.0
        %v1066 = vsel %vm618, %v1050, 0.0
        %v1067 = vsel %vm619, %v1051, 0.0
        %v1068 = vsel %vm618, %v1052, 0.0
        %v1069 = vsel %vm619, %v1053, 0.0
        %1070 = vrot.lane.b32.xlu0 %v573, 94
        %v1071 = vpop.permute.xlu0 %1070
        %1072 = vrot.lane.b32.xlu0 %v574, 94
        %v1073 = vpop.permute.xlu0 %1072
        %1074 = vrot.lane.b32.xlu0 %v575, 94
        %v1075 = vpop.permute.xlu0 %1074
        %1076 = vrot.lane.b32.xlu0 %v576, 94
        %v1077 = vpop.permute.xlu0 %1076
        %1078 = vrot.lane.b32.xlu0 %v577, 94
        %v1079 = vpop.permute.xlu0 %1078
        %1080 = vrot.lane.b32.xlu0 %v578, 94
        %v1081 = vpop.permute.xlu0 %1080
        %1082 = vrot.lane.b32.xlu0 %v579, 94
        %v1083 = vpop.permute.xlu0 %1082
        %1084 = vrot.lane.b32.xlu0 %v580, 94
        %v1085 = vpop.permute.xlu0 %1084
        %1086 = vrot.lane.b32.xlu0 %v581, 94
        %v1087 = vpop.permute.xlu0 %1086
        %1088 = vrot.lane.b32.xlu0 %v582, 94
        %v1089 = vpop.permute.xlu0 %1088
        %1090 = vrot.lane.b32.xlu0 %v583, 94
        %v1091 = vpop.permute.xlu0 %1090
        %1092 = vrot.lane.b32.xlu0 %v584, 94
        %v1093 = vpop.permute.xlu0 %1092
        %vm1094 = vcmask 769024
        %v1095 = vsel %vm1094, %v1071, %v1073
        %v1096 = vsel %vm1094, %v1073, %v1075
        %v1097 = vsel %vm1094, %v1077, %v1079
        %v1098 = vsel %vm1094, %v1079, %v1081
        %v1099 = vsel %vm1094, %v1083, %v1085
        %v1100 = vsel %vm1094, %v1085, %v1087
        %v1101 = vsel %vm1094, %v1089, %v1091
        %v1102 = vsel %vm1094, %v1091, %v1093
        %v1111 = vsel %vm630, %v1095, 0.0
        %v1112 = vsel %vm631, %v1096, 0.0
        %v1113 = vsel %vm630, %v1097, 0.0
        %v1114 = vsel %vm631, %v1098, 0.0
        %v1115 = vsel %vm630, %v1099, 0.0
        %v1116 = vsel %vm631, %v1100, 0.0
        %v1117 = vsel %vm630, %v1101, 0.0
        %v1118 = vsel %vm631, %v1102, 0.0
        %1119 = vrot.lane.b32.xlu0 %v573, 95
        %v1120 = vpop.permute.xlu0 %1119
        %1121 = vrot.lane.b32.xlu0 %v574, 95
        %v1122 = vpop.permute.xlu0 %1121
        %1123 = vrot.lane.b32.xlu0 %v575, 95
        %v1124 = vpop.permute.xlu0 %1123
        %1125 = vrot.lane.b32.xlu0 %v576, 95
        %v1126 = vpop.permute.xlu0 %1125
        %1127 = vrot.lane.b32.xlu0 %v577, 95
        %v1128 = vpop.permute.xlu0 %1127
        %1129 = vrot.lane.b32.xlu0 %v578, 95
        %v1130 = vpop.permute.xlu0 %1129
        %1131 = vrot.lane.b32.xlu0 %v579, 95
        %v1132 = vpop.permute.xlu0 %1131
        %1133 = vrot.lane.b32.xlu0 %v580, 95
        %v1134 = vpop.permute.xlu0 %1133
        %1135 = vrot.lane.b32.xlu0 %v581, 95
        %v1136 = vpop.permute.xlu0 %1135
        %1137 = vrot.lane.b32.xlu0 %v582, 95
        %v1138 = vpop.permute.xlu0 %1137
        %1139 = vrot.lane.b32.xlu0 %v583, 95
        %v1140 = vpop.permute.xlu0 %1139
        %1141 = vrot.lane.b32.xlu0 %v584, 95
        %v1142 = vpop.permute.xlu0 %1141
        %vm1143 = vcmask 777216
        %v1144 = vsel %vm1143, %v1120, %v1122
        %v1145 = vsel %vm1143, %v1122, %v1124
        %v1146 = vsel %vm1143, %v1126, %v1128
        %v1147 = vsel %vm1143, %v1128, %v1130
        %v1148 = vsel %vm1143, %v1132, %v1134
        %v1149 = vsel %vm1143, %v1134, %v1136
        %v1150 = vsel %vm1143, %v1138, %v1140
        %v1151 = vsel %vm1143, %v1140, %v1142
        %v1161 = vsel %vm873, %v615, 0
        %1163 = vmatprep.subr.mxu0 %v1063
        %1164 = vmatpush1.msra.mxu0 %v1062
        %1165 = vmatprep.subr.mxu0 %v1065
        %1166 = vmatpush1.msra.mxu0 %v1064
        %1167 = vmatprep.subr.mxu0 %v1067
        %1168 = vmatpush1.msra.mxu0 %v1066
        %1169 = vmatprep.subr.mxu0 %v1069
        %1170 = vmatpush1.msra.mxu0 %v1068
        %1171 = vmatprep.subr.mxu0 %v1145
        %1172 = vmatpush1.msra.mxu0 %v1144
        %1173 = vmatprep.subr.mxu0 %v1147
        %1174 = vmatpush1.msra.mxu0 %v1146
        %1175 = vmatprep.subr.mxu0 %v1149
        %1176 = vmatpush1.msra.mxu0 %v1148
        %1177 = vmatprep.subr.mxu0 %v1151
        %1178 = vmatpush1.msra.mxu0 %v1150
        %1179 = vmatprep.subr.mxu0 %v1112
        %1180 = vmatpush1.msra.mxu0 %v1111
        %1181 = vmatprep.subr.mxu0 %v1114
        %1182 = vmatpush1.msra.mxu0 %v1113
        %1183 = vmatprep.subr.mxu0 %v1116
        %1184 = vmatpush1.msra.mxu0 %v1115
        %1185 = vmatprep.subr.mxu0 %v1118
        %1186 = vmatpush1.msra.mxu0 %v1117
        %1187 = vmatprep.subr.mxu0 0.0
        %1188 = vmatpush1.msra.mxu0 0.0
        %1189 = vmatprep.subr.mxu0 0.0
        %1190 = vmatpush1.msra.mxu0 0.0
        %1191 = vmatprep.subr.mxu0 0.0
        %1192 = vmatpush1.msra.mxu0 0.0
        %1193 = vmatprep.subr.mxu0 0.0
        %1194 = vmatpush1.msra.mxu0 0.0
        %1195 = vmatprep.subr.mxu0 0.0
        %1196 = vmatpush1.msra.mxu0 0.0
        %1197 = vmatprep.subr.mxu0 0.0
        %1198 = vmatpush1.msra.mxu0 0.0
        %1199 = vmatprep.subr.mxu0 0.0
        %1200 = vmatpush1.msra.mxu0 0.0
        %1201 = vmatprep.subr.mxu0 0.0
        %1202 = vmatpush1.msra.mxu0 0.0
        %1203 = vmatprep.subr.mxu0 0.0
        %1204 = vmatpush1.msra.mxu0 0.0
        %1205 = vmatprep.subr.mxu0 0.0
        %1206 = vmatpush1.msra.mxu0 0.0
        %1207 = vmatprep.subr.mxu0 0.0
        %1208 = vmatpush1.msra.mxu0 0.0
        %1209 = vmatprep.subr.mxu0 0.0
        %1210 = vmatpush1.msra.mxu0 0.0
        %1211 = vmatprep.subr.mxu0 0.0
        %1212 = vmatpush1.msra.mxu0 0.0
        %1213 = vmatprep.subr.mxu0 0.0
        %1214 = vmatpush1.msra.mxu0 0.0
        %1215 = vmatprep.subr.mxu0 0.0
        %1216 = vmatpush1.msra.mxu0 0.0
        %1217 = vmatprep.subr.mxu0 0.0
        %1218 = vmatpush1.msra.mxu0 0.0
        %1219 = vmatprep.subr.mxu0 0.0
        %1220 = vmatpush1.msra.mxu0 0.0
        %1221 = vmatprep.subr.mxu0 0.0
        %1222 = vmatpush1.msra.mxu0 0.0
        %1223 = vmatprep.subr.mxu0 0.0
        %1224 = vmatpush1.msra.mxu0 0.0
        %1225 = vmatprep.subr.mxu0 0.0
        %1226 = vmatpush1.msra.mxu0 0.0
        %1227 = vmatprep.mubr.f32.mxu0 0.0
        %1228 = vmatmul.mubr.f32.gmra.mrb[0].mxu0 %v1161
        %v1229 = vpop.f32.mrb[0].mxu0
        %v1230 = vadd.f32 0.0, %v1229
        %v1231 = vpop.f32.mrb[0].mxu0
        %v1232 = vadd.f32 0.0, %v1231
        %1233 = vdwg.mxu0
        %v1234 = vadd.f32 %v1018, %v1230
        %v1235 = vadd.f32 %v1020, %v1232
        %1236 = vst [vmem:[%s192] sm:$0xff] %v1234
        %1237 = vst [vmem:[%s192 + $0x8] sm:$0xff] %v1235
        %s1238 = sand.u32 %s108, 1
        %s1239 = scalar_lea.sflag [#allocation4], %s1238
        %s1240 = sand.u32 %s108, 1
        %s1241 = smul.addr %s1240, 16
        %s1242 = scalar_lea.vmem [#allocation5], %s1241
        // Predicated region
        $region37: #{tpu_custom_call.1} parent=31 // pred_check
          %p1243 = pneg %p118
        $region38: #{tpu_custom_call.1} parent=31 // pred_check_branch
          %1245 = sbr.rel (%p1243) target = $region40
        $region39: #{tpu_custom_call.1} parent=31 // pred_region
          %s1247 = ssub.s32 256, 256
          %1248 = vsyncadd %s1239, %s1247
          %s1249 = smul.addr %s23, 2
          %s1250 = smul.addr %s22, 2
          %s1251 = sadd.s32 %s1249, %s1250
          %s1252 = smul.addr %s1251, 128
          %s1253 = scalar_lea.hbm %s3, %s1252
          %s1255 = sshll.u32 %s1242, 4
          %s1256 = int_to_ptr.vmem [resolvable:$true] %s1255
          %1258 = dma.vmem_to_hbm [thread:$0]  %s1256, 256, %s1253, %s1239
        $region40: #{tpu_custom_call.1} parent=31 // pred_fallthru
          _
      $region32: #{tpu_custom_call.1} parent=5 // pred_fallthru
        _
      %p1259 = scmp.le.s32.totalorder 2, %s13
      // Predicated region
      $region41: #{tpu_custom_call.1} parent=5 // pred_check
        %p1260 = pneg %p1259
      $region42: #{tpu_custom_call.1} parent=5 // pred_check_branch
        %1262 = sbr.rel (%p1260) target = $region44
      $region43: #{tpu_custom_call.1} parent=5 // pred_region
        %s1263 = ssub.s32 %s13, 2
        // Predicated region
        $region45: #{tpu_custom_call.1} parent=43 // pred_check
          %p1264 = pneg %p124
        $region46: #{tpu_custom_call.1} parent=43 // pred_check_branch
          %1266 = sbr.rel (%p1264) target = $region48
        $region47: #{tpu_custom_call.1} parent=43 // pred_region
          %s1267 = sand.u32 %s109, 1
          %s1268 = scalar_lea.sflag [#allocation4], %s1267
          %s1269 = sand.u32 %s109, 1
          %s1270 = smul.addr %s1269, 16
          %s1271 = scalar_lea.vmem [#allocation5], %s1270
          %1272 = dma.done %s1268, 256
        $region48: #{tpu_custom_call.1} parent=43 // pred_fallthru
          _
      $region44: #{tpu_custom_call.1} parent=5 // pred_fallthru
        _
    $region6: #{tpu_custom_call.1} parent=1 // loop_footer
      %s17 = sadd.s32 1, %s13
    $region7: #{tpu_custom_call.1} parent=1 // loop_footer_branch
      %12 = sbr.rel target = $region3
    $region8: #{tpu_custom_call.1} parent=1 // loop_exit
      _
    %1273 = vsyncpa [#allocation3], 1
    %s1274 = scalar_lea.sflag [#allocation3], 1
    %1275 = vsyncpa %s1274, 1
    %1276 = vsyncpa [#allocation4], 1
    %s1277 = scalar_lea.sflag [#allocation4], 1
    %1278 = vsyncpa %s1277, 1

</llo_original>
